<compile_context>
chip_gen: v5e
topology: v5e:2x2
jax: 0.10.0
libtpu: 0.0.40
codegen_flags: <defaults>
</compile_context>

<pallas_src>
import math
import functools

import jax
import jax.numpy as jnp
from jax import lax
from jax.experimental import pallas as pl
from jax.experimental.pallas import tpu as pltpu


# ----------------------------------------------------------------------------
# Kernels
# ----------------------------------------------------------------------------
def _broadcast_pos(pos, batch):
    """(tile_s, tile_e) pos tile -> (tile_s*batch, tile_e), each row repeated `batch` times."""
    if batch == 1:
        return pos
    ts, c = pos.shape
    return jnp.broadcast_to(pos[:, None, :], (ts, batch, c)).reshape(ts * batch, c)


def _pe_add_kernel(x_ref, pos_ref, o_ref, *, batch):
    # eval-mode forward: out = x + pos (pos broadcast over the batch axis)
    o_ref[...] = x_ref[...] + _broadcast_pos(pos_ref[...], batch)


def _pe_add_dropout_kernel(seed_ref, x_ref, pos_ref, o_ref, *,
                           batch, dropout_p, total_cols):
    # training-mode forward: out = dropout(x + pos)
    y = x_ref[...] + _broadcast_pos(pos_ref[...], batch)
    rows, cols = y.shape

    # Global element index (unique per logical element; padded edge values are discarded
    # by the partial-block writeback).  Stateless hash -> portable (Mosaic + interpret),
    # no pltpu PRNG primitives, no extra HBM traffic.
    r = lax.broadcasted_iota(jnp.int32, (rows, cols), 0) + pl.program_id(0) * rows
    c = lax.broadcasted_iota(jnp.int32, (rows, cols), 1) + pl.program_id(1) * cols
    idx = (r * total_cols + c).astype(jnp.uint32)

    seed_u = seed_ref[0].astype(jnp.uint32) + jnp.uint32(0x9E3779B9)
    h = idx ^ (seed_u * jnp.uint32(0x85EBCA6B))
    h ^= h >> 16
    h *= jnp.uint32(0x7FEB352D)
    h ^= h >> 15
    h *= jnp.uint32(0x846CA68B)
    h ^= h >> 16

    # keep element iff uniform_bits >= threshold; saturate so p ~ 1.0 doesn't wrap to 0.
    threshold = jnp.uint32(min(int(round(dropout_p * 4294967296.0)), 4294967295))
    keep = h >= threshold
    # Keep the arithmetic in the input dtype (bf16 stays bf16 on v6e/v7x).
    scale = jnp.asarray(1.0 / (1.0 - dropout_p), dtype=y.dtype)
    o_ref[...] = jnp.where(keep, y * scale, jnp.zeros((), dtype=y.dtype))


# ----------------------------------------------------------------------------
# Parameter / buffer setup (mirrors PositionalEncoding.__init__)
# ----------------------------------------------------------------------------
def make_pos_embedding(emb_size: int, maxlen: int = 5000, dtype=jnp.float32):
    den = jnp.exp(-jnp.arange(0, emb_size, 2, dtype=jnp.float32)
                  * math.log(10000.0) / emb_size)
    pos = jnp.arange(0, maxlen, dtype=jnp.float32).reshape(maxlen, 1)
    pe = jnp.zeros((maxlen, emb_size), dtype=jnp.float32)
    pe = pe.at[:, 0::2].set(jnp.sin(pos * den))
    pe = pe.at[:, 1::2].set(jnp.cos(pos * den))
    return pe[:, None, :].astype(dtype)  # (maxlen, 1, emb_size)


# ----------------------------------------------------------------------------
# Tiling heuristics
# ----------------------------------------------------------------------------
def _round_up(x: int, m: int) -> int:
    return ((x + m - 1) // m) * m


def _vmem_budget_and_limit():
    """Generation-aware VMEM numbers: (tile budget, scoped vmem_limit_bytes)."""
    cap = None
    get_info = getattr(pltpu, "get_tpu_info", None)
    if get_info is not None:
        try:
            cap = getattr(get_info(), "vmem_capacity_bytes", None)
        except Exception:  # no TPU visible (e.g. interpret mode on CPU)
            cap = None
    if not cap:
        cap = 64 * 1024 * 1024  # conservative fallback: v7x per-TensorCore VMEM
    limit = min(cap * 3 // 4, cap - (8 << 20))   # leave internal-scratch headroom
    budget = cap // 2                            # double-buffered tiles fill ~half
    return int(budget), int(limit)


def _choose_tiles(S: int, B: int, E: int, itemsize: int, budget: int):
    """Pick (tile_s, tile_e) so one grid step's double-buffered footprint fits `budget`.

    Footprint per step ~= 2 * (x block + out block + pos block)
                        = 2 * tile_s * lanepad(tile_e) * (2*B + 1) * itemsize.
    tile_s is a multiple of 8 (pos rows are a block of the full maxlen table);
    tile_e is either the full E or a multiple of 128.
    """
    lanes_full = _round_up(E, 128)                 # lane padding of a full-E block in VMEM
    per_seq_row = 2 * (2 * B + 1) * itemsize       # bytes / seq-position / lane, double-buffered

    if E <= 128 or 8 * lanes_full * per_seq_row <= budget:
        tile_e = E                                 # lane-dense full rows (block dim == full dim)
        lanes = lanes_full
    else:
        # Even an 8-row full-E block overflows -> add an E axis (multiple of 128 lanes).
        lanes = max(128, (budget // (8 * per_seq_row)) // 128 * 128)
        tile_e = lanes

    tile_s = max(8, (budget // (lanes * per_seq_row)) // 8 * 8)

    # Keep >= 2 seq steps so v7x can shard the "parallel" axis across both TensorCores
    # (free on single-TC v5e/v6e).  No artificial upper cap beyond that.
    if S > 8:
        tile_s = min(tile_s, _round_up(pl.cdiv(S, 2), 8))
    tile_s = min(tile_s, _round_up(S, 8))
    # NOTE: for extremely large B (>~2000 at f32) the 8-row floor can still exceed the
    # budget; that is a robustness limit, not a correctness issue.
    return tile_s, tile_e


# ----------------------------------------------------------------------------
# Wrapper
# ----------------------------------------------------------------------------
def positional_encoding(token_embedding, pos_embedding, *, dropout_p=0.1,
                        training=False, seed=0, donate_input=False):
    S, B, E = token_embedding.shape
    maxlen = pos_embedding.shape[0]
    dtype = token_embedding.dtype
    itemsize = jnp.dtype(dtype).itemsize

    # Lane/sublane-dense 2D views (free, row-major reshapes).  The full pos table is
    # passed; the index_map selects the rows it needs (no wrapper-side [:S] slice).
    x2 = token_embedding.reshape(S * B, E)
    pos2 = pos_embedding.reshape(maxlen, E).astype(dtype)

    budget, vmem_limit = _vmem_budget_and_limit()
    tile_s, tile_e = _choose_tiles(S, B, E, itemsize, budget)
    grid = (pl.cdiv(S, tile_s), pl.cdiv(E, tile_e))

    # index_maps take (*grid_indices, *scalar_prefetch_refs); `*_` absorbs the latter.
    x_spec = pl.BlockSpec((tile_s * B, tile_e), lambda i, j, *_: (i, j))
    pos_spec = pl.BlockSpec((tile_s, tile_e), lambda i, j, *_: (i, j))
    out_spec = pl.BlockSpec((tile_s * B, tile_e), lambda i, j, *_: (i, j))
    out_shape = jax.ShapeDtypeStruct((S * B, E), dtype)

    compiler_params = pltpu.CompilerParams(
        # Pure elementwise: both axes fully parallel -> megacore sharding on v7x.
        dimension_semantics=("parallel", "parallel"),
        vmem_limit_bytes=vmem_limit,
    )

    if (not training) or dropout_p <= 0.0:
        # Dropout is identity in eval mode.
        kernel = functools.partial(_pe_add_kernel, batch=B)
        grid_spec = pltpu.PrefetchScalarGridSpec(
            num_scalar_prefetch=0, grid=grid,
            in_specs=[x_spec, pos_spec], out_specs=out_spec)
        out2 = pl.pallas_call(
            kernel,
            out_shape=out_shape,
            grid_spec=grid_spec,
            compiler_params=compiler_params,
            input_output_aliases=({0: 0} if donate_input else {}),
        )(x2, pos2)
    else:
        kernel = functools.partial(_pe_add_dropout_kernel, batch=B,
                                   dropout_p=float(dropout_p), total_cols=E)
        seed_arr = jnp.asarray([seed], dtype=jnp.int32)
        grid_spec = pltpu.PrefetchScalarGridSpec(
            num_scalar_prefetch=1, grid=grid,
            in_specs=[x_spec, pos_spec], out_specs=out_spec)
        out2 = pl.pallas_call(
            kernel,
            out_shape=out_shape,
            grid_spec=grid_spec,
            compiler_params=compiler_params,
            input_output_aliases=({1: 0} if donate_input else {}),
        )(seed_arr, x2, pos2)

    return out2.reshape(S, B, E)


# ----------------------------------------------------------------------------
# Demo / correctness check
# ----------------------------------------------------------------------------
if __name__ == "__main__":
    SEQ, BATCH, EMB = 8, 2, 32
    MAXLEN = 64
    DROPOUT_P = 0.1

    key = jax.random.PRNGKey(0)
    x = jax.random.normal(key, (SEQ, BATCH, EMB), dtype=jnp.float32)

    pos_embedding = make_pos_embedding(EMB, maxlen=MAXLEN)
    ref = x + pos_embedding[:SEQ]

    # Eval-mode forward (dropout == identity), matches PyTorch module.eval()
    out = positional_encoding(x, pos_embedding, dropout_p=DROPOUT_P, training=False)
    out = jax.block_until_ready(out)
    assert out.shape == (SEQ, BATCH, EMB)
    assert jnp.allclose(out, ref, atol=1e-6, rtol=1e-6)

    # Training-mode forward: every element must be either exactly dropped (0) or the
    # kept value (x + pos) / (1 - p); keep rate should be near 1 - p.
    out_tr = positional_encoding(x, pos_embedding, dropout_p=DROPOUT_P,
                                 training=True, seed=1234)
    out_tr = jax.block_until_ready(out_tr)
    assert out_tr.shape == (SEQ, BATCH, EMB)
    scaled = ref / (1.0 - DROPOUT_P)
    ok = jnp.isclose(out_tr, 0.0, atol=1e-6) | jnp.isclose(out_tr, scaled,
                                                           rtol=1e-5, atol=1e-5)
    assert bool(jnp.all(ok))
    keep_frac = float(jnp.mean((out_tr != 0.0).astype(jnp.float32)))
    assert 0.5 < keep_frac <= 1.0

    print("KERNEL_OK")
</pallas_src>

<mosaic_0001>
module attributes {stable_mosaic.version = 11 : i64} {
  func.func @_pe_add_kernel(%arg0: i32, %arg1: i32, %arg2: memref<16x32xf32, #tpu.memory_space<vmem>>, %arg3: memref<8x32xf32, #tpu.memory_space<vmem>>, %arg4: memref<16x32xf32, #tpu.memory_space<vmem>>) attributes {dimension_semantics = [#tpu.dimension_semantics<parallel>, #tpu.dimension_semantics<parallel>], iteration_bounds = array<i64: 1, 1>, scalar_prefetch = 0 : i64, scratch_operands = 0 : i64, tpu.core_type = #tpu.core_type<tc>, window_params = [{transform_indices = @transform_0, window_bounds = array<i64: 16, 32>}, {transform_indices = @transform_1, window_bounds = array<i64: 8, 32>}, {transform_indices = @transform_2, window_bounds = array<i64: 16, 32>}]} {
    %c0 = arith.constant 0 : index
    %c0_0 = arith.constant 0 : index
    %0 = vector.load %arg2[%c0, %c0_0] : memref<16x32xf32, #tpu.memory_space<vmem>>, vector<16x32xf32>
    %c0_1 = arith.constant 0 : index
    %c0_2 = arith.constant 0 : index
    %1 = vector.load %arg3[%c0_1, %c0_2] : memref<8x32xf32, #tpu.memory_space<vmem>>, vector<8x32xf32>
    %2 = vector.shape_cast %1 : vector<8x32xf32> to vector<8x1x32xf32>
    %3 = vector.shape_cast %2 : vector<8x1x32xf32> to vector<8x1x32xf32>
    %4 = vector.broadcast %3 : vector<8x1x32xf32> to vector<8x2x32xf32>
    %5 = vector.shape_cast %4 : vector<8x2x32xf32> to vector<16x32xf32>
    %6 = arith.addf %0, %5 : vector<16x32xf32>
    %c0_3 = arith.constant 0 : index
    %c0_4 = arith.constant 0 : index
    %7 = vector.load %arg4[%c0_3, %c0_4] : memref<16x32xf32, #tpu.memory_space<vmem>>, vector<16x32xf32>
    tpu.vector_store %arg4[%c0_3, %c0_4], %6 {strides = array<i32>} : memref<16x32xf32, #tpu.memory_space<vmem>>, vector<16x32xf32>,
    return
  }
  func.func @transform_0(%arg0: i32, %arg1: i32) -> (i32, i32) {
    %c0_i32 = arith.constant 0 : i32
    return %arg0, %arg1 : i32, i32
  }
  func.func @transform_1(%arg0: i32, %arg1: i32) -> (i32, i32) {
    %c0_i32 = arith.constant 0 : i32
    return %arg0, %arg1 : i32, i32
  }
  func.func @transform_2(%arg0: i32, %arg1: i32) -> (i32, i32) {
    %c0_i32 = arith.constant 0 : i32
    return %arg0, %arg1 : i32, i32
  }
}

</mosaic_0001>

<llo_original>
// kernel: tpu_custom_call.1
$region0: #{tpu_custom_call.1}
  #allocation0 [shape = 'u32[]', space=smem, size = 0x4, offset = 0x4, fixed_abs, tag = 'smem constant byte address 0x4 - core index']
  #allocation1 [shape = 'u32[72,128]{1,0:T(1,128)}', space=vmem, size = 0x9000, scoped, tag = 'internal scratch']
  %s0 = inlined_call_operand.vmem [shape: f32[16,32], index: 0, kind: input, shape index: {}]
  %s1 = inlined_call_operand.vmem [shape: f32[64,32], index: 1, kind: input, shape index: {}]
  %s2 = inlined_call_operand.hbm [shape: f32[16,32], index: 2, kind: output, shape index: {}]
  %s3 = sld [smem:[#allocation0]]
  $region18: #{tpu_custom_call.1} parent=0
    _
  %s5 = ssub.s32 1, %s3
  %s6 = scalar_select 0, %s5, %s3
  $region1: #{tpu_custom_call.1} parent=0
    #allocation2 [shape = 'u8[8192]{0}', space=vmem, size = 0x2000, scoped, tag = 'output window, operand 0, single buffered']
    #allocation3 [shape = 's32[1]{0}', space=sflag, size = 0x4, scoped, tag = 'scoped memory for tpu_custom_call.1']
    %7 = vsyncpa [#allocation3], 0
    // Predicated region
    $region2: #{tpu_custom_call.1} parent=1 // pred_check
      _
    $region3: #{tpu_custom_call.1} parent=1 // pred_check_branch
      %9 = sbr.rel (0) target = $region5
    $region4: #{tpu_custom_call.1} parent=1 // pred_region
      _
    $region5: #{tpu_custom_call.1} parent=1 // pred_fallthru
      _
    // Predicated region
    $region6: #{tpu_custom_call.1} parent=1 // pred_check
      _
    $region7: #{tpu_custom_call.1} parent=1 // pred_check_branch
      %11 = sbr.rel (0) target = $region9
    $region8: #{tpu_custom_call.1} parent=1 // pred_region
      _
    $region9: #{tpu_custom_call.1} parent=1 // pred_fallthru
      _
    %v12 = vld [vmem:[%s0] sm:$0xff]
    %v13 = vld [vmem:[%s0 + $0x8] sm:$0xff]
    %v14 = vld [vmem:[%s1] sm:$0xff]
    %v16 = vrot.slane %v14, 1
    %v17 = vrot.slane %v14, 2
    %v18 = vrot.slane %v14, 3
    %v19 = vrot.slane %v14, 4
    %v20 = vrot.slane %v14, 5
    %v21 = vrot.slane %v14, 6
    %v22 = vrot.slane %v14, 7
    %v23 = vperm.slane %v14, 0
    %v24 = vperm.slane %v16, 0
    %v25 = vperm.slane %v17, 0
    %v26 = vperm.slane %v18, 0
    %v27 = vperm.slane %v19, 0
    %v28 = vperm.slane %v20, 0
    %v29 = vperm.slane %v21, 0
    %v30 = vperm.slane %v22, 0
    %31 = vst [vmem:[#allocation1] ss:$4 sm:$0xff] %v23
    %s32 = scalar_lea.vmem [#allocation1], 1
    %33 = vst [vmem:[%s32] ss:$4 sm:$0xff] %v24
    %s34 = scalar_lea.vmem [#allocation1], 2
    %35 = vst [vmem:[%s34] ss:$4 sm:$0xff] %v25
    %s36 = scalar_lea.vmem [#allocation1], 3
    %37 = vst [vmem:[%s36] ss:$4 sm:$0xff] %v26
    %s38 = scalar_lea.vmem [#allocation1], 32
    %39 = vst [vmem:[%s38] ss:$4 sm:$0xff] %v27
    %s40 = scalar_lea.vmem [#allocation1], 33
    %41 = vst [vmem:[%s40] ss:$4 sm:$0xff] %v28
    %s42 = scalar_lea.vmem [#allocation1], 34
    %43 = vst [vmem:[%s42] ss:$4 sm:$0xff] %v29
    %s44 = scalar_lea.vmem [#allocation1], 35
    %45 = vst [vmem:[%s44] ss:$4 sm:$0xff] %v30
    %v46 = vld.sshfl [vmem:[#allocation1] sm:$0xff pattern:$0x73625140]
    %v47 = vld.sshfl [vmem:[#allocation1 + $0x20] sm:$0xff pattern:$0x73625140]
    %v50 = vadd.f32 %v12, %v46
    %v51 = vadd.f32 %v13, %v47
    %vm52 = vcmask 261120
    %53 = vst.msk [vmem:[#allocation2] sm:$0xff] %vm52, %v50
    %54 = vst.msk [vmem:[#allocation2 + $0x8] sm:$0xff] %vm52, %v51
    // Predicated region
    $region10: #{tpu_custom_call.1} parent=1 // pred_check
      _
    $region11: #{tpu_custom_call.1} parent=1 // pred_check_branch
      %56 = sbr.rel (0) target = $region13
    $region12: #{tpu_custom_call.1} parent=1 // pred_region
      %58 = vsyncadd [#allocation3], 0
      %s59 = sshll.u32 [#allocation2], 4
      %s60 = int_to_ptr.vmem [resolvable:$true] %s59
      %s61 = sshll.u32 %s2, 4
      %s62 = int_to_ptr.hbm [resolvable:$true] %s61
      %67 = dma.vmem_to_hbm [thread:$0]  %s60, 256, %s62, [#allocation3], 128, 128, 8
    $region13: #{tpu_custom_call.1} parent=1 // pred_fallthru
      _
    // Predicated region
    $region14: #{tpu_custom_call.1} parent=1 // pred_check
      _
    $region15: #{tpu_custom_call.1} parent=1 // pred_check_branch
      %69 = sbr.rel (0) target = $region17
    $region16: #{tpu_custom_call.1} parent=1 // pred_region
      %71 = dma.done [#allocation3], 256
    $region17: #{tpu_custom_call.1} parent=1 // pred_fallthru
      _
    %72 = vsyncpa [#allocation3], 1

</llo_original>
